<compile_context>
chip_gen: v5e
topology: v5e:2x2
jax: 0.10.0
libtpu: 0.0.40
codegen_flags: <defaults>
</compile_context>

<pallas_src>
import functools

import jax
import jax.numpy as jnp
from jax.experimental import pallas as pl
from jax.experimental.pallas import tpu as pltpu

IN_FEATURES = 784
HIDDEN = 20
OUT_FEATURES = 10
HIDDEN_PAD = 128                      # hidden dim padded to lane width
MAX_BLOCK_B = 2048                    # x tile <= 6.3 MiB f32 / 3.2 MiB bf16 per buffer
VMEM_LIMIT_BYTES = 32 * 1024 * 1024   # safe on v5e/v6e/v7x


def mlp_kernel(x_ref, w1_ref, b1_ref, w2_ref, b2_ref, o_ref):
    # x_ref:  (TB, 784)  compute dtype (f32 or bf16)
    # w1_ref: (784, 128) compute dtype    b1_ref: (1, 128) f32
    # w2_ref: (128, 10)  compute dtype    b2_ref: (1, 10)  f32
    # o_ref:  (TB, 10)   f32
    x = x_ref[...]
    # layer1: Linear(784, 20) (output lanes zero-padded to 128)
    h = jnp.dot(x, w1_ref[...], preferred_element_type=jnp.float32)
    h = jnp.maximum(h + b1_ref[...], 0.0)          # ReLU; padded lanes stay 0
    h = h.astype(w2_ref.dtype)                     # MXU input dtype for layer2
    # layer2: Linear(20, 10) (padded input rows of w2 multiply the zero lanes)
    y = jnp.dot(h, w2_ref[...], preferred_element_type=jnp.float32)
    o_ref[...] = (y + b2_ref[...]).astype(o_ref.dtype)


def _pad_to(a, shape):
    pads = [(0, t - s) for s, t in zip(a.shape, shape)]
    return jnp.pad(a, pads)


def _round_up(n, m):
    return ((n + m - 1) // m) * m


def _pick_block_b(batch, block_b):
    """Static batch-tile selection (runs at trace time)."""
    if block_b is None:
        if batch <= 8:
            return batch                                   # single full-dim block
        # >= 2 grid steps when possible (keeps both v7x TensorCores fed),
        # capped so double-buffered x/out tiles sit well inside scoped VMEM.
        tb = _round_up(-(-batch // 2), 8)                  # cdiv(batch, 2), sublane-aligned
        return min(tb, MAX_BLOCK_B)
    tb = _round_up(block_b, 8)                             # sublane-constraint guard
    if tb >= batch:
        return batch                                       # full-dim block is always legal
    return min(tb, MAX_BLOCK_B)


@functools.partial(jax.jit, static_argnames=("block_b",))
def number_classifier_forward(x, w1, b1, w2, b2, block_b=None):
    """y = relu(x @ w1 + b1) @ w2 + b2  (Number_Classifier forward).

    x:  (B, 784), float32 or bfloat16.  Passing bf16 halves the dominant HBM
        read traffic; matmuls always accumulate in f32.
    w1: (784, 20)   b1: (1, 20)   (stored transposed vs. torch: y = x @ W + b)
    w2: (20, 10)    b2: (1, 10)
    returns (B, 10) float32 logits.
    """
    B = x.shape[0]
    compute_dtype = x.dtype
    b1 = b1.reshape(1, HIDDEN).astype(jnp.float32)
    b2 = b2.reshape(1, OUT_FEATURES).astype(jnp.float32)

    # Tiny one-shot layout plumbing on the weights only (no passes over x/out).
    w1p = _pad_to(w1.astype(compute_dtype), (IN_FEATURES, HIDDEN_PAD))
    b1p = _pad_to(b1, (1, HIDDEN_PAD))
    w2p = _pad_to(w2.astype(compute_dtype), (HIDDEN_PAD, OUT_FEATURES))

    tb = _pick_block_b(B, block_b)
    grid = (pl.cdiv(B, tb),)            # ragged last tile handled by Pallas

    x_bytes = x.dtype.itemsize
    cost = pl.CostEstimate(
        flops=2 * B * IN_FEATURES * HIDDEN_PAD + 2 * B * HIDDEN_PAD * OUT_FEATURES,
        transcendentals=0,
        bytes_accessed=(
            B * IN_FEATURES * x_bytes                                   # x read
            + (IN_FEATURES * HIDDEN_PAD + HIDDEN_PAD * OUT_FEATURES) * x_bytes
            + (HIDDEN_PAD + OUT_FEATURES) * 4                           # biases
            + B * OUT_FEATURES * 4                                      # out write
        ),
    )

    out = pl.pallas_call(
        mlp_kernel,
        out_shape=jax.ShapeDtypeStruct((B, OUT_FEATURES), jnp.float32),
        grid=grid,
        in_specs=[
            # x tiles stream through VMEM (auto double-buffered)
            pl.BlockSpec((tb, IN_FEATURES), lambda i: (i, 0)),
            # weights / biases: same block every iteration -> VMEM-resident
            pl.BlockSpec((IN_FEATURES, HIDDEN_PAD), lambda i: (0, 0)),
            pl.BlockSpec((1, HIDDEN_PAD), lambda i: (0, 0)),
            pl.BlockSpec((HIDDEN_PAD, OUT_FEATURES), lambda i: (0, 0)),
            pl.BlockSpec((1, OUT_FEATURES), lambda i: (0, 0)),
        ],
        # Narrow (tb, 10) output block: ~13% less HBM traffic than a lane-dense
        # 128-wide slab and no wrapper-side slice; store slot has ample slack.
        out_specs=pl.BlockSpec((tb, OUT_FEATURES), lambda i: (i, 0)),
        compiler_params=pltpu.CompilerParams(
            dimension_semantics=("parallel",),
            vmem_limit_bytes=VMEM_LIMIT_BYTES,
        ),
        cost_estimate=cost,
    )(x, w1p, b1p, w2p, b2)

    return out


def init_params(key):
    # Deterministic init mimicking nn.Linear's uniform(-1/sqrt(fan_in), 1/sqrt(fan_in)).
    k1, k2, k3, k4 = jax.random.split(key, 4)
    lim1 = 1.0 / jnp.sqrt(float(IN_FEATURES))
    lim2 = 1.0 / jnp.sqrt(float(HIDDEN))
    w1 = jax.random.uniform(k1, (IN_FEATURES, HIDDEN), jnp.float32, -lim1, lim1)
    b1 = jax.random.uniform(k2, (1, HIDDEN), jnp.float32, -lim1, lim1)
    w2 = jax.random.uniform(k3, (HIDDEN, OUT_FEATURES), jnp.float32, -lim2, lim2)
    b2 = jax.random.uniform(k4, (1, OUT_FEATURES), jnp.float32, -lim2, lim2)
    return w1, b1, w2, b2


def _reference_f32(x, w1, b1, w2, b2):
    return jnp.maximum(x @ w1 + b1, 0.0) @ w2 + b2


def _reference_bf16(x_bf16, w1, b1, w2, b2):
    # Mirrors the kernel's bf16-operand / f32-accumulate path.
    h = jnp.dot(x_bf16, w1.astype(jnp.bfloat16),
                preferred_element_type=jnp.float32) + b1
    h = jnp.maximum(h, 0.0).astype(jnp.bfloat16)
    return jnp.dot(h, w2.astype(jnp.bfloat16),
                   preferred_element_type=jnp.float32) + b2


if __name__ == "__main__":
    key = jax.random.PRNGKey(0)
    kx, kp = jax.random.split(key)
    w1, b1, w2, b2 = init_params(kp)

    # Case 1: tiny batch -> single full-dim block.
    B1 = 8
    x1 = jax.random.normal(kx, (B1, IN_FEATURES), jnp.float32)
    out1 = jax.block_until_ready(number_classifier_forward(x1, w1, b1, w2, b2))
    ref1 = _reference_f32(x1, w1, b1, w2, b2)
    assert out1.shape == (B1, OUT_FEATURES) and out1.dtype == jnp.float32
    assert jnp.allclose(out1, ref1, atol=1e-4, rtol=1e-4)

    # Case 2: larger batch, explicit small tile -> multi-step pipelined grid.
    B2 = 64
    x2 = jax.random.normal(jax.random.fold_in(kx, 1), (B2, IN_FEATURES), jnp.float32)
    out2 = jax.block_until_ready(
        number_classifier_forward(x2, w1, b1, w2, b2, block_b=16)
    )
    ref2 = _reference_f32(x2, w1, b1, w2, b2)
    assert out2.shape == (B2, OUT_FEATURES)
    assert jnp.allclose(out2, ref2, atol=1e-4, rtol=1e-4)

    # Case 3: bf16 input (halved x read traffic) + ragged last tile (B % tb != 0),
    # exercising the no-pad / no-slice path.
    B3 = 200
    x3 = jax.random.normal(jax.random.fold_in(kx, 2), (B3, IN_FEATURES), jnp.float32)
    x3b = x3.astype(jnp.bfloat16)
    out3 = jax.block_until_ready(number_classifier_forward(x3b, w1, b1, w2, b2))
    ref3 = _reference_bf16(x3b, w1, b1, w2, b2)
    assert out3.shape == (B3, OUT_FEATURES) and out3.dtype == jnp.float32
    assert jnp.allclose(out3, ref3, atol=2e-2, rtol=2e-2)

    print("KERNEL_OK")
</pallas_src>

<mosaic_0001>
module attributes {stable_mosaic.version = 11 : i64} {
  func.func @mlp_kernel(%arg0: i32, %arg1: memref<8x784xf32, #tpu.memory_space<vmem>>, %arg2: memref<784x128xf32, #tpu.memory_space<vmem>>, %arg3: memref<1x128xf32, #tpu.memory_space<vmem>>, %arg4: memref<128x10xf32, #tpu.memory_space<vmem>>, %arg5: memref<1x10xf32, #tpu.memory_space<vmem>>, %arg6: memref<8x10xf32, #tpu.memory_space<vmem>>) attributes {dimension_semantics = [#tpu.dimension_semantics<parallel>], iteration_bounds = array<i64: 1>, scalar_prefetch = 0 : i64, scratch_operands = 0 : i64, tpu.core_type = #tpu.core_type<tc>, window_params = [{transform_indices = @transform_0, window_bounds = array<i64: 8, 784>}, {pipeline_mode = #tpu.pipeline_mode<synchronous>, transform_indices = @transform_1, window_bounds = array<i64: 784, 128>}, {pipeline_mode = #tpu.pipeline_mode<synchronous>, transform_indices = @transform_2, window_bounds = array<i64: 1, 128>}, {pipeline_mode = #tpu.pipeline_mode<synchronous>, transform_indices = @transform_3, window_bounds = array<i64: 128, 10>}, {pipeline_mode = #tpu.pipeline_mode<synchronous>, transform_indices = @transform_4, window_bounds = array<i64: 1, 10>}, {transform_indices = @transform_5, window_bounds = array<i64: 8, 10>}]} {
    %c0 = arith.constant 0 : index
    %c0_0 = arith.constant 0 : index
    %0 = vector.load %arg1[%c0, %c0_0] : memref<8x784xf32, #tpu.memory_space<vmem>>, vector<8x784xf32>
    %c0_1 = arith.constant 0 : index
    %c0_2 = arith.constant 0 : index
    %1 = vector.load %arg2[%c0_1, %c0_2] : memref<784x128xf32, #tpu.memory_space<vmem>>, vector<784x128xf32>
    %cst = arith.constant dense<0.000000e+00> : vector<8x128xf32>
    %2 = tpu.matmul %0, %1, %cst {dimension_numbers = #tpu.dot_dimension_numbers<[1], [0], [0], [1], [0, 0, 1, 1], [], []>} : vector<8x784xf32>, vector<784x128xf32>, vector<8x128xf32> -> vector<8x128xf32>
    %c0_3 = arith.constant 0 : index
    %c0_4 = arith.constant 0 : index
    %3 = vector.load %arg3[%c0_3, %c0_4] : memref<1x128xf32, #tpu.memory_space<vmem>>, vector<1x128xf32>
    %4 = vector.broadcast %3 : vector<1x128xf32> to vector<8x128xf32>
    %5 = arith.addf %2, %4 : vector<8x128xf32>
    %cst_5 = arith.constant 0.000000e+00 : f32
    %6 = vector.broadcast %cst_5 : f32 to vector<8x128xf32>
    %7 = arith.maximumf %5, %6 : vector<8x128xf32>
    %c0_6 = arith.constant 0 : index
    %c0_7 = arith.constant 0 : index
    %8 = vector.load %arg4[%c0_6, %c0_7] : memref<128x10xf32, #tpu.memory_space<vmem>>, vector<128x10xf32>
    %cst_8 = arith.constant dense<0.000000e+00> : vector<8x10xf32>
    %9 = tpu.matmul %7, %8, %cst_8 {dimension_numbers = #tpu.dot_dimension_numbers<[1], [0], [0], [1], [0, 0, 1, 1], [], []>} : vector<8x128xf32>, vector<128x10xf32>, vector<8x10xf32> -> vector<8x10xf32>
    %c0_9 = arith.constant 0 : index
    %c0_10 = arith.constant 0 : index
    %10 = vector.load %arg5[%c0_9, %c0_10] : memref<1x10xf32, #tpu.memory_space<vmem>>, vector<1x10xf32>
    %11 = vector.broadcast %10 : vector<1x10xf32> to vector<8x10xf32>
    %12 = arith.addf %9, %11 : vector<8x10xf32>
    %c0_11 = arith.constant 0 : index
    %c0_12 = arith.constant 0 : index
    %13 = vector.load %arg6[%c0_11, %c0_12] : memref<8x10xf32, #tpu.memory_space<vmem>>, vector<8x10xf32>
    tpu.vector_store %arg6[%c0_11, %c0_12], %12 {strides = array<i32>} : memref<8x10xf32, #tpu.memory_space<vmem>>, vector<8x10xf32>,
    return
  }
  func.func @transform_0(%arg0: i32) -> (i32, i32) {
    %c0_i32 = arith.constant 0 : i32
    %c0_i32_0 = arith.constant 0 : i32
    return %arg0, %c0_i32 : i32, i32
  }
  func.func @transform_1(%arg0: i32) -> (i32, i32) {
    %c0_i32 = arith.constant 0 : i32
    %c0_i32_0 = arith.constant 0 : i32
    %c0_i32_1 = arith.constant 0 : i32
    return %c0_i32, %c0_i32_0 : i32, i32
  }
  func.func @transform_2(%arg0: i32) -> (i32, i32) {
    %c0_i32 = arith.constant 0 : i32
    %c0_i32_0 = arith.constant 0 : i32
    %c0_i32_1 = arith.constant 0 : i32
    return %c0_i32, %c0_i32_0 : i32, i32
  }
  func.func @transform_3(%arg0: i32) -> (i32, i32) {
    %c0_i32 = arith.constant 0 : i32
    %c0_i32_0 = arith.constant 0 : i32
    %c0_i32_1 = arith.constant 0 : i32
    return %c0_i32, %c0_i32_0 : i32, i32
  }
  func.func @transform_4(%arg0: i32) -> (i32, i32) {
    %c0_i32 = arith.constant 0 : i32
    %c0_i32_0 = arith.constant 0 : i32
    %c0_i32_1 = arith.constant 0 : i32
    return %c0_i32, %c0_i32_0 : i32, i32
  }
  func.func @transform_5(%arg0: i32) -> (i32, i32) {
    %c0_i32 = arith.constant 0 : i32
    %c0_i32_0 = arith.constant 0 : i32
    return %arg0, %c0_i32 : i32, i32
  }
}

</mosaic_0001>

<llo_original>
// kernel: number_classifier_forward.1
$region0: #{number_classifier_forward.1}
  #allocation0 [shape = 'u32[]', space=smem, size = 0x4, offset = 0x4, fixed_abs, tag = 'smem constant byte address 0x4 - core index']
  #allocation1 [shape = 'u32[72,128]{1,0:T(1,128)}', space=vmem, size = 0x9000, scoped, tag = 'internal scratch']
  %s0 = inlined_call_operand.vmem [shape: f32[8,784], index: 0, kind: input, shape index: {}]
  %s1 = inlined_call_operand.vmem [shape: f32[784,128], index: 1, kind: input, shape index: {}]
  %s2 = inlined_call_operand.vmem [shape: f32[1,128], index: 2, kind: input, shape index: {}]
  %s3 = inlined_call_operand.vmem [shape: f32[128,10], index: 3, kind: input, shape index: {}]
  %s4 = inlined_call_operand.vmem [shape: f32[1,10], index: 4, kind: input, shape index: {}]
  %s5 = inlined_call_operand.hbm [shape: f32[8,10], index: 5, kind: output, shape index: {}]
  %s6 = sld [smem:[#allocation0]]
  $region30: #{number_classifier_forward.1} parent=0
    _
  %s8 = ssub.s32 1, %s6
  %s9 = scalar_select 0, %s8, %s6
  $region1: #{number_classifier_forward.1} parent=0
    #allocation2 [shape = 'u8[4096]{0}', space=vmem, size = 0x1000, scoped, tag = 'output window, operand 0, single buffered']
    #allocation3 [shape = 's32[1]{0}', space=sflag, size = 0x4, scoped, tag = 'scoped memory for number_classifier_forward.1']
    %10 = vsyncpa [#allocation3], 0
    // Predicated region
    $region2: #{number_classifier_forward.1} parent=1 // pred_check
      _
    $region3: #{number_classifier_forward.1} parent=1 // pred_check_branch
      %12 = sbr.rel (0) target = $region5
    $region4: #{number_classifier_forward.1} parent=1 // pred_region
      _
    $region5: #{number_classifier_forward.1} parent=1 // pred_fallthru
      _
    // Predicated region
    $region6: #{number_classifier_forward.1} parent=1 // pred_check
      _
    $region7: #{number_classifier_forward.1} parent=1 // pred_check_branch
      %14 = sbr.rel (0) target = $region9
    $region8: #{number_classifier_forward.1} parent=1 // pred_region
      _
    $region9: #{number_classifier_forward.1} parent=1 // pred_fallthru
      _
    // Predicated region
    $region10: #{number_classifier_forward.1} parent=1 // pred_check
      _
    $region11: #{number_classifier_forward.1} parent=1 // pred_check_branch
      %16 = sbr.rel (0) target = $region13
    $region12: #{number_classifier_forward.1} parent=1 // pred_region
      _
    $region13: #{number_classifier_forward.1} parent=1 // pred_fallthru
      _
    // Predicated region
    $region14: #{number_classifier_forward.1} parent=1 // pred_check
      _
    $region15: #{number_classifier_forward.1} parent=1 // pred_check_branch
      %18 = sbr.rel (0) target = $region17
    $region16: #{number_classifier_forward.1} parent=1 // pred_region
      _
    $region17: #{number_classifier_forward.1} parent=1 // pred_fallthru
      _
    // Predicated region
    $region18: #{number_classifier_forward.1} parent=1 // pred_check
      _
    $region19: #{number_classifier_forward.1} parent=1 // pred_check_branch
      %20 = sbr.rel (0) target = $region21
    $region20: #{number_classifier_forward.1} parent=1 // pred_region
      _
    $region21: #{number_classifier_forward.1} parent=1 // pred_fallthru
      _
    %v21 = vld [vmem:[%s0] sm:$0xff]
    %v22 = vld [vmem:[%s0 + $0x8] sm:$0xff]
    %v23 = vld [vmem:[%s0 + $0x10] sm:$0xff]
    %v24 = vld [vmem:[%s0 + $0x18] sm:$0xff]
    %v25 = vld [vmem:[%s0 + $0x20] sm:$0xff]
    %v26 = vld [vmem:[%s0 + $0x28] sm:$0xff]
    %v27 = vld [vmem:[%s0 + $0x30] sm:$0xff]
    %v28 = vld [vmem:[%s1] sm:$0xff]
    %v29 = vld [vmem:[%s1 + $0x8] sm:$0xff]
    %v30 = vld [vmem:[%s1 + $0x10] sm:$0xff]
    %v31 = vld [vmem:[%s1 + $0x18] sm:$0xff]
    %v32 = vld [vmem:[%s1 + $0x20] sm:$0xff]
    %v33 = vld [vmem:[%s1 + $0x28] sm:$0xff]
    %v34 = vld [vmem:[%s1 + $0x30] sm:$0xff]
    %v35 = vld [vmem:[%s1 + $0x38] sm:$0xff]
    %v36 = vld [vmem:[%s1 + $0x40] sm:$0xff]
    %v37 = vld [vmem:[%s1 + $0x48] sm:$0xff]
    %v38 = vld [vmem:[%s1 + $0x50] sm:$0xff]
    %v39 = vld [vmem:[%s1 + $0x58] sm:$0xff]
    %v40 = vld [vmem:[%s1 + $0x60] sm:$0xff]
    %v41 = vld [vmem:[%s1 + $0x68] sm:$0xff]
    %v42 = vld [vmem:[%s1 + $0x70] sm:$0xff]
    %v43 = vld [vmem:[%s1 + $0x78] sm:$0xff]
    %v44 = vld [vmem:[%s1 + $0x80] sm:$0xff]
    %v45 = vld [vmem:[%s1 + $0x88] sm:$0xff]
    %v46 = vld [vmem:[%s1 + $0x90] sm:$0xff]
    %v47 = vld [vmem:[%s1 + $0x98] sm:$0xff]
    %v48 = vld [vmem:[%s1 + $0xa0] sm:$0xff]
    %v49 = vld [vmem:[%s1 + $0xa8] sm:$0xff]
    %v50 = vld [vmem:[%s1 + $0xb0] sm:$0xff]
    %v51 = vld [vmem:[%s1 + $0xb8] sm:$0xff]
    %v52 = vld [vmem:[%s1 + $0xc0] sm:$0xff]
    %v53 = vld [vmem:[%s1 + $0xc8] sm:$0xff]
    %v54 = vld [vmem:[%s1 + $0xd0] sm:$0xff]
    %v55 = vld [vmem:[%s1 + $0xd8] sm:$0xff]
    %v56 = vld [vmem:[%s1 + $0xe0] sm:$0xff]
    %v57 = vld [vmem:[%s1 + $0xe8] sm:$0xff]
    %v58 = vld [vmem:[%s1 + $0xf0] sm:$0xff]
    %v59 = vld [vmem:[%s1 + $0xf8] sm:$0xff]
    %v60 = vld [vmem:[%s1 + $0x100] sm:$0xff]
    %v61 = vld [vmem:[%s1 + $0x108] sm:$0xff]
    %v62 = vld [vmem:[%s1 + $0x110] sm:$0xff]
    %v63 = vld [vmem:[%s1 + $0x118] sm:$0xff]
    %v64 = vld [vmem:[%s1 + $0x120] sm:$0xff]
    %v65 = vld [vmem:[%s1 + $0x128] sm:$0xff]
    %v66 = vld [vmem:[%s1 + $0x130] sm:$0xff]
    %v67 = vld [vmem:[%s1 + $0x138] sm:$0xff]
    %v68 = vld [vmem:[%s1 + $0x140] sm:$0xff]
    %v69 = vld [vmem:[%s1 + $0x148] sm:$0xff]
    %v70 = vld [vmem:[%s1 + $0x150] sm:$0xff]
    %v71 = vld [vmem:[%s1 + $0x158] sm:$0xff]
    %v72 = vld [vmem:[%s1 + $0x160] sm:$0xff]
    %v73 = vld [vmem:[%s1 + $0x168] sm:$0xff]
    %v74 = vld [vmem:[%s1 + $0x170] sm:$0xff]
    %v75 = vld [vmem:[%s1 + $0x178] sm:$0xff]
    %v76 = vld [vmem:[%s1 + $0x180] sm:$0xff]
    %v77 = vld [vmem:[%s1 + $0x188] sm:$0xff]
    %v78 = vld [vmem:[%s1 + $0x190] sm:$0xff]
    %v79 = vld [vmem:[%s1 + $0x198] sm:$0xff]
    %v80 = vld [vmem:[%s1 + $0x1a0] sm:$0xff]
    %v81 = vld [vmem:[%s1 + $0x1a8] sm:$0xff]
    %v82 = vld [vmem:[%s1 + $0x1b0] sm:$0xff]
    %v83 = vld [vmem:[%s1 + $0x1b8] sm:$0xff]
    %v84 = vld [vmem:[%s1 + $0x1c0] sm:$0xff]
    %v85 = vld [vmem:[%s1 + $0x1c8] sm:$0xff]
    %v86 = vld [vmem:[%s1 + $0x1d0] sm:$0xff]
    %v87 = vld [vmem:[%s1 + $0x1d8] sm:$0xff]
    %v88 = vld [vmem:[%s1 + $0x1e0] sm:$0xff]
    %v89 = vld [vmem:[%s1 + $0x1e8] sm:$0xff]
    %v90 = vld [vmem:[%s1 + $0x1f0] sm:$0xff]
    %v91 = vld [vmem:[%s1 + $0x1f8] sm:$0xff]
    %v92 = vld [vmem:[%s1 + $0x200] sm:$0xff]
    %v93 = vld [vmem:[%s1 + $0x208] sm:$0xff]
    %v94 = vld [vmem:[%s1 + $0x210] sm:$0xff]
    %v95 = vld [vmem:[%s1 + $0x218] sm:$0xff]
    %v96 = vld [vmem:[%s1 + $0x220] sm:$0xff]
    %v97 = vld [vmem:[%s1 + $0x228] sm:$0xff]
    %v98 = vld [vmem:[%s1 + $0x230] sm:$0xff]
    %v99 = vld [vmem:[%s1 + $0x238] sm:$0xff]
    %v100 = vld [vmem:[%s1 + $0x240] sm:$0xff]
    %v101 = vld [vmem:[%s1 + $0x248] sm:$0xff]
    %v102 = vld [vmem:[%s1 + $0x250] sm:$0xff]
    %v103 = vld [vmem:[%s1 + $0x258] sm:$0xff]
    %v104 = vld [vmem:[%s1 + $0x260] sm:$0xff]
    %v105 = vld [vmem:[%s1 + $0x268] sm:$0xff]
    %v106 = vld [vmem:[%s1 + $0x270] sm:$0xff]
    %v107 = vld [vmem:[%s1 + $0x278] sm:$0xff]
    %v108 = vld [vmem:[%s1 + $0x280] sm:$0xff]
    %v109 = vld [vmem:[%s1 + $0x288] sm:$0xff]
    %v110 = vld [vmem:[%s1 + $0x290] sm:$0xff]
    %v111 = vld [vmem:[%s1 + $0x298] sm:$0xff]
    %v112 = vld [vmem:[%s1 + $0x2a0] sm:$0xff]
    %v113 = vld [vmem:[%s1 + $0x2a8] sm:$0xff]
    %v114 = vld [vmem:[%s1 + $0x2b0] sm:$0xff]
    %v115 = vld [vmem:[%s1 + $0x2b8] sm:$0xff]
    %v116 = vld [vmem:[%s1 + $0x2c0] sm:$0xff]
    %v117 = vld [vmem:[%s1 + $0x2c8] sm:$0xff]
    %v118 = vld [vmem:[%s1 + $0x2d0] sm:$0xff]
    %v119 = vld [vmem:[%s1 + $0x2d8] sm:$0xff]
    %v120 = vld [vmem:[%s1 + $0x2e0] sm:$0xff]
    %v121 = vld [vmem:[%s1 + $0x2e8] sm:$0xff]
    %v122 = vld [vmem:[%s1 + $0x2f0] sm:$0xff]
    %v123 = vld [vmem:[%s1 + $0x2f8] sm:$0xff]
    %v124 = vld [vmem:[%s1 + $0x300] sm:$0xff]
    %v125 = vld [vmem:[%s1 + $0x308] sm:$0xff]
    %v126 = vld [vmem:[%s2] sm:$0x1]
    %v128 = vperm.slane %v126, 0
    %vm130 = vcmask 130048
    %v132 = vsel %vm130, %v27, 0
    %134 = vmatpush.msra.mxu0 %v43
    %135 = vmatpush.msra.mxu0 %v42
    %136 = vmatpush.msra.mxu0 %v41
    %137 = vmatpush.msra.mxu0 %v40
    %138 = vmatpush.msra.mxu0 %v39
    %139 = vmatpush.msra.mxu0 %v38
    %140 = vmatpush.msra.mxu0 %v37
    %141 = vmatpush.msra.mxu0 %v36
    %142 = vmatpush.msra.mxu0 %v35
    %143 = vmatpush.msra.mxu0 %v34
    %144 = vmatpush.msra.mxu0 %v33
    %145 = vmatpush.msra.mxu0 %v32
    %146 = vmatpush.msra.mxu0 %v31
    %147 = vmatpush.msra.mxu0 %v30
    %148 = vmatpush.msra.mxu0 %v29
    %149 = vmatpush.msra.mxu0 %v28
    %150 = vmatmul.f32.gmra.mxu0 %v21
    %v151 = vpop.f32.mrf.mxu0
    %v152 = vadd.f32 %v128, %v151
    %153 = vdwg.mxu0
    %154 = vmatpush.msra.mxu0 %v59
    %155 = vmatpush.msra.mxu0 %v58
    %156 = vmatpush.msra.mxu0 %v57
    %157 = vmatpush.msra.mxu0 %v56
    %158 = vmatpush.msra.mxu0 %v55
    %159 = vmatpush.msra.mxu0 %v54
    %160 = vmatpush.msra.mxu0 %v53
    %161 = vmatpush.msra.mxu0 %v52
    %162 = vmatpush.msra.mxu0 %v51
    %163 = vmatpush.msra.mxu0 %v50
    %164 = vmatpush.msra.mxu0 %v49
    %165 = vmatpush.msra.mxu0 %v48
    %166 = vmatpush.msra.mxu0 %v47
    %167 = vmatpush.msra.mxu0 %v46
    %168 = vmatpush.msra.mxu0 %v45
    %169 = vmatpush.msra.mxu0 %v44
    %170 = vmatmul.f32.gmra.mxu0 %v22
    %v171 = vpop.f32.mrf.mxu0
    %v172 = vadd.f32 %v152, %v171
    %173 = vdwg.mxu0
    %174 = vmatpush.msra.mxu0 %v75
    %175 = vmatpush.msra.mxu0 %v74
    %176 = vmatpush.msra.mxu0 %v73
    %177 = vmatpush.msra.mxu0 %v72
    %178 = vmatpush.msra.mxu0 %v71
    %179 = vmatpush.msra.mxu0 %v70
    %180 = vmatpush.msra.mxu0 %v69
    %181 = vmatpush.msra.mxu0 %v68
    %182 = vmatpush.msra.mxu0 %v67
    %183 = vmatpush.msra.mxu0 %v66
    %184 = vmatpush.msra.mxu0 %v65
    %185 = vmatpush.msra.mxu0 %v64
    %186 = vmatpush.msra.mxu0 %v63
    %187 = vmatpush.msra.mxu0 %v62
    %188 = vmatpush.msra.mxu0 %v61
    %189 = vmatpush.msra.mxu0 %v60
    %190 = vmatmul.f32.gmra.mxu0 %v23
    %v191 = vpop.f32.mrf.mxu0
    %v192 = vadd.f32 %v172, %v191
    %193 = vdwg.mxu0
    %194 = vmatpush.msra.mxu0 %v91
    %195 = vmatpush.msra.mxu0 %v90
    %196 = vmatpush.msra.mxu0 %v89
    %197 = vmatpush.msra.mxu0 %v88
    %198 = vmatpush.msra.mxu0 %v87
    %199 = vmatpush.msra.mxu0 %v86
    %200 = vmatpush.msra.mxu0 %v85
    %201 = vmatpush.msra.mxu0 %v84
    %202 = vmatpush.msra.mxu0 %v83
    %203 = vmatpush.msra.mxu0 %v82
    %204 = vmatpush.msra.mxu0 %v81
    %205 = vmatpush.msra.mxu0 %v80
    %206 = vmatpush.msra.mxu0 %v79
    %207 = vmatpush.msra.mxu0 %v78
    %208 = vmatpush.msra.mxu0 %v77
    %209 = vmatpush.msra.mxu0 %v76
    %210 = vmatmul.f32.gmra.mxu0 %v24
    %v211 = vpop.f32.mrf.mxu0
    %v212 = vadd.f32 %v192, %v211
    %213 = vdwg.mxu0
    %214 = vmatpush.msra.mxu0 %v107
    %215 = vmatpush.msra.mxu0 %v106
    %216 = vmatpush.msra.mxu0 %v105
    %217 = vmatpush.msra.mxu0 %v104
    %218 = vmatpush.msra.mxu0 %v103
    %219 = vmatpush.msra.mxu0 %v102
    %220 = vmatpush.msra.mxu0 %v101
    %221 = vmatpush.msra.mxu0 %v100
    %222 = vmatpush.msra.mxu0 %v99
    %223 = vmatpush.msra.mxu0 %v98
    %224 = vmatpush.msra.mxu0 %v97
    %225 = vmatpush.msra.mxu0 %v96
    %226 = vmatpush.msra.mxu0 %v95
    %227 = vmatpush.msra.mxu0 %v94
    %228 = vmatpush.msra.mxu0 %v93
    %229 = vmatpush.msra.mxu0 %v92
    %230 = vmatmul.f32.gmra.mxu0 %v25
    %v231 = vpop.f32.mrf.mxu0
    %v232 = vadd.f32 %v212, %v231
    %233 = vdwg.mxu0
    %234 = vmatpush.msra.mxu0 %v123
    %235 = vmatpush.msra.mxu0 %v122
    %236 = vmatpush.msra.mxu0 %v121
    %237 = vmatpush.msra.mxu0 %v120
    %238 = vmatpush.msra.mxu0 %v119
    %239 = vmatpush.msra.mxu0 %v118
    %240 = vmatpush.msra.mxu0 %v117
    %241 = vmatpush.msra.mxu0 %v116
    %242 = vmatpush.msra.mxu0 %v115
    %243 = vmatpush.msra.mxu0 %v114
    %244 = vmatpush.msra.mxu0 %v113
    %245 = vmatpush.msra.mxu0 %v112
    %246 = vmatpush.msra.mxu0 %v111
    %247 = vmatpush.msra.mxu0 %v110
    %248 = vmatpush.msra.mxu0 %v109
    %249 = vmatpush.msra.mxu0 %v108
    %250 = vmatmul.f32.gmra.mxu0 %v26
    %v251 = vpop.f32.mrf.mxu0
    %v252 = vadd.f32 %v232, %v251
    %253 = vdwg.mxu0
    %254 = vmatpush.msra.mxu0 0.0
    %255 = vmatpush.msra.mxu0 0.0
    %256 = vmatpush.msra.mxu0 0.0
    %257 = vmatpush.msra.mxu0 0.0
    %258 = vmatpush.msra.mxu0 0.0
    %259 = vmatpush.msra.mxu0 0.0
    %260 = vmatpush.msra.mxu0 0.0
    %261 = vmatpush.msra.mxu0 0.0
    %262 = vmatpush.msra.mxu0 0.0
    %263 = vmatpush.msra.mxu0 0.0
    %264 = vmatpush.msra.mxu0 0.0
    %265 = vmatpush.msra.mxu0 0.0
    %266 = vmatpush.msra.mxu0 0.0
    %267 = vmatpush.msra.mxu0 0.0
    %268 = vmatpush.msra.mxu0 %v125
    %269 = vmatpush.msra.mxu0 %v124
    %270 = vmatmul.f32.gmra.mxu0 %v132
    %v271 = vpop.f32.mrf.mxu0
    %v272 = vadd.f32 %v252, %v271
    %273 = vdwg.mxu0
    %v274 = vmax.f32 %v272, 0.0
    %v275 = vld [vmem:[%s3] sm:$0xff]
    %v276 = vld [vmem:[%s3 + $0x8] sm:$0xff]
    %v277 = vld [vmem:[%s3 + $0x10] sm:$0xff]
    %v278 = vld [vmem:[%s3 + $0x18] sm:$0xff]
    %v279 = vld [vmem:[%s3 + $0x20] sm:$0xff]
    %v280 = vld [vmem:[%s3 + $0x28] sm:$0xff]
    %v281 = vld [vmem:[%s3 + $0x30] sm:$0xff]
    %v282 = vld [vmem:[%s3 + $0x38] sm:$0xff]
    %v283 = vld [vmem:[%s3 + $0x40] sm:$0xff]
    %v284 = vld [vmem:[%s3 + $0x48] sm:$0xff]
    %v285 = vld [vmem:[%s3 + $0x50] sm:$0xff]
    %v286 = vld [vmem:[%s3 + $0x58] sm:$0xff]
    %v287 = vld [vmem:[%s3 + $0x60] sm:$0xff]
    %v288 = vld [vmem:[%s3 + $0x68] sm:$0xff]
    %v289 = vld [vmem:[%s3 + $0x70] sm:$0xff]
    %v290 = vld [vmem:[%s3 + $0x78] sm:$0xff]
    %v291 = vld [vmem:[%s4] sm:$0x1]
    %v293 = vperm.slane %v291, 0
    %295 = vmatpush.msra.mxu0 %v290
    %296 = vmatpush.msra.mxu0 %v289
    %297 = vmatpush.msra.mxu0 %v288
    %298 = vmatpush.msra.mxu0 %v287
    %299 = vmatpush.msra.mxu0 %v286
    %300 = vmatpush.msra.mxu0 %v285
    %301 = vmatpush.msra.mxu0 %v284
    %302 = vmatpush.msra.mxu0 %v283
    %303 = vmatpush.msra.mxu0 %v282
    %304 = vmatpush.msra.mxu0 %v281
    %305 = vmatpush.msra.mxu0 %v280
    %306 = vmatpush.msra.mxu0 %v279
    %307 = vmatpush.msra.mxu0 %v278
    %308 = vmatpush.msra.mxu0 %v277
    %309 = vmatpush.msra.mxu0 %v276
    %310 = vmatpush.msra.mxu0 %v275
    %311 = vmatmul.f32.gmra.mxu0 %v274
    %v312 = vpop.f32.mrf.mxu0
    %v313 = vadd.f32 %v293, %v312
    %314 = vdwg.mxu0
    %vm315 = vcmask 80896
    %316 = vst.msk [vmem:[#allocation2] sm:$0xff] %vm315, %v313
    // Predicated region
    $region22: #{number_classifier_forward.1} parent=1 // pred_check
      _
    $region23: #{number_classifier_forward.1} parent=1 // pred_check_branch
      %318 = sbr.rel (0) target = $region25
    $region24: #{number_classifier_forward.1} parent=1 // pred_region
      %320 = vsyncadd [#allocation3], 0
      %s322 = sshll.u32 [#allocation2], 4
      %s323 = int_to_ptr.vmem [resolvable:$true] %s322
      %s324 = sshll.u32 %s5, 4
      %s325 = int_to_ptr.hbm [resolvable:$true] %s324
      %327 = dma.vmem_to_hbm [thread:$0]  %s323, 128, %s325, [#allocation3]
    $region25: #{number_classifier_forward.1} parent=1 // pred_fallthru
      _
    // Predicated region
    $region26: #{number_classifier_forward.1} parent=1 // pred_check
      _
    $region27: #{number_classifier_forward.1} parent=1 // pred_check_branch
      %329 = sbr.rel (0) target = $region29
    $region28: #{number_classifier_forward.1} parent=1 // pred_region
      %331 = dma.done [#allocation3], 128
    $region29: #{number_classifier_forward.1} parent=1 // pred_fallthru
      _
    %332 = vsyncpa [#allocation3], 1

</llo_original>
